<compile_context>
chip_gen: v5e
topology: v5e:2x2
jax: 0.10.0
libtpu: 0.0.40
codegen_flags: <defaults>
</compile_context>

<pallas_src>
import functools

import jax
import jax.numpy as jnp
from jax.experimental import pallas as pl
from jax.experimental.pallas import tpu as pltpu

FEAT_DIM = 2048
LANE = 128


def _round_up(x, m):
    return ((x + m - 1) // m) * m


def _is_v5e():
    try:
        kind = jax.devices()[0].device_kind.lower()
        return "v5" in kind and ("lite" in kind or "v5e" in kind)
    except Exception:
        return False


def net_fc_kernel(feat_ref, w_ref, b_ref, logits_ref, *, bf16_matmul):
    """Fully-connected head: logits = feat @ W_t + b (MXU, f32 accumulation)."""
    feat = feat_ref[...]
    w = w_ref[...]
    if bf16_matmul:
        feat = feat.astype(jnp.bfloat16)
        w = w.astype(jnp.bfloat16)
    logits = jnp.dot(feat, w, preferred_element_type=jnp.float32)
    logits_ref[...] = (logits + b_ref[...]).astype(logits_ref.dtype)


def prepare_fc_params(fc_weight, fc_bias, dtype=jnp.float32):
    """One-time prep: lane-dense zero-padded (2048, 128k) W_t and (1, 128k) bias."""
    num_class = fc_weight.shape[0]
    padded_c = max(LANE, _round_up(num_class, LANE))
    w_t = (
        jnp.zeros((FEAT_DIM, padded_c), dtype)
        .at[:, :num_class]
        .set(fc_weight.T.astype(dtype))
    )
    b2d = (
        jnp.zeros((1, padded_c), jnp.float32)
        .at[:, :num_class]
        .set(fc_bias.astype(jnp.float32))
    )
    return w_t, b2d, num_class


def net_forward(x_nchw, fc_params, *, block_rows=1024, bf16_matmul=None):
    """x_nchw: (N, 2048, 1, 1) backbone output.  Returns (feature, out)."""
    w_t, b2d, num_class = fc_params
    if bf16_matmul is None:
        bf16_matmul = _is_v5e()

    n = x_nchw.shape[0]
    feat = x_nchw.reshape(n, -1)                 # torch.flatten(x, start_dim=1)
    assert feat.shape[1] == FEAT_DIM
    padded_c = w_t.shape[1]

    # Row tile: multiple of 8 (sublane); >=2 grid steps when possible so the
    # "parallel" batch axis shards across v7x's 2 TensorCores.  No batch pad:
    # the ragged last block is handled by Pallas' masked OOB stores.
    tn = min(block_rows, max(8, _round_up(pl.cdiv(n, 2), 8)))
    grid = (pl.cdiv(n, tn),)

    logits_p = pl.pallas_call(
        functools.partial(net_fc_kernel, bf16_matmul=bf16_matmul),
        out_shape=jax.ShapeDtypeStruct((n, padded_c), feat.dtype),
        grid=grid,
        in_specs=[
            pl.BlockSpec((tn, FEAT_DIM), lambda i: (i, 0)),        # feature tile
            pl.BlockSpec((FEAT_DIM, padded_c), lambda i: (0, 0)),  # W_t (resident)
            pl.BlockSpec((1, padded_c), lambda i: (0, 0)),         # bias (resident)
        ],
        out_specs=pl.BlockSpec((tn, padded_c), lambda i: (i, 0)),
        compiler_params=pltpu.CompilerParams(
            dimension_semantics=("parallel",),
            vmem_limit_bytes=32 * 1024 * 1024,
        ),
    )(feat, w_t, b2d)

    out = logits_p[:, :num_class]
    # `feature` is the flattened backbone activation — no kernel copy needed.
    return feat, out


if __name__ == "__main__":
    key = jax.random.PRNGKey(0)
    kx, kw, kb = jax.random.split(key, 3)

    batch = 2
    num_class = 10
    # Backbone (ResNet-50 trunk) output: (N, 2048, 1, 1) NCHW.
    x = jax.random.normal(kx, (batch, FEAT_DIM, 1, 1), dtype=jnp.float32)

    # Deterministic nn.Linear(2048, num_class) init (PyTorch U(-1/sqrt(k), 1/sqrt(k))).
    bound = 1.0 / jnp.sqrt(jnp.float32(FEAT_DIM))
    fc_weight = jax.random.uniform(
        kw, (num_class, FEAT_DIM), dtype=jnp.float32, minval=-bound, maxval=bound
    )
    fc_bias = jax.random.uniform(
        kb, (num_class,), dtype=jnp.float32, minval=-bound, maxval=bound
    )

    fc_params = prepare_fc_params(fc_weight, fc_bias)   # once, not per forward
    feature, out = net_forward(x, fc_params)
    jax.block_until_ready((feature, out))

    # Reference check in plain JAX.
    feat_ref = x.reshape(batch, -1)
    out_ref = feat_ref @ fc_weight.T + fc_bias
    assert feature.shape == (batch, FEAT_DIM)
    assert out.shape == (batch, num_class)
    # bf16 MXU operands (v5e auto-path) change logits at ~1e-2 relative level.
    tol = 5e-2 if _is_v5e() else 1e-4
    assert jnp.allclose(feature, feat_ref, atol=1e-5)
    assert jnp.allclose(out, out_ref, atol=tol)

    print("KERNEL_OK")
</pallas_src>

<mosaic_0001>
module attributes {stable_mosaic.version = 11 : i64} {
  func.func @net_fc_kernel(%arg0: i32, %arg1: memref<8x2048xf32, #tpu.memory_space<vmem>>, %arg2: memref<2048x128xf32, #tpu.memory_space<vmem>>, %arg3: memref<1x128xf32, #tpu.memory_space<vmem>>, %arg4: memref<8x128xf32, #tpu.memory_space<vmem>>) attributes {dimension_semantics = [#tpu.dimension_semantics<parallel>], iteration_bounds = array<i64: 1>, scalar_prefetch = 0 : i64, scratch_operands = 0 : i64, tpu.core_type = #tpu.core_type<tc>, window_params = [{transform_indices = @transform_0, window_bounds = array<i64: 8, 2048>}, {pipeline_mode = #tpu.pipeline_mode<synchronous>, transform_indices = @transform_1, window_bounds = array<i64: 2048, 128>}, {pipeline_mode = #tpu.pipeline_mode<synchronous>, transform_indices = @transform_2, window_bounds = array<i64: 1, 128>}, {transform_indices = @transform_3, window_bounds = array<i64: 8, 128>}]} {
    %c0 = arith.constant 0 : index
    %c0_0 = arith.constant 0 : index
    %0 = vector.load %arg1[%c0, %c0_0] : memref<8x2048xf32, #tpu.memory_space<vmem>>, vector<8x2048xf32>
    %c0_1 = arith.constant 0 : index
    %c0_2 = arith.constant 0 : index
    %1 = vector.load %arg2[%c0_1, %c0_2] : memref<2048x128xf32, #tpu.memory_space<vmem>>, vector<2048x128xf32>
    %cst = arith.constant dense<0.000000e+00> : vector<8x128xf32>
    %2 = tpu.matmul %0, %1, %cst {dimension_numbers = #tpu.dot_dimension_numbers<[1], [0], [0], [1], [0, 0, 1, 1], [], []>} : vector<8x2048xf32>, vector<2048x128xf32>, vector<8x128xf32> -> vector<8x128xf32>
    %c0_3 = arith.constant 0 : index
    %c0_4 = arith.constant 0 : index
    %3 = vector.load %arg3[%c0_3, %c0_4] : memref<1x128xf32, #tpu.memory_space<vmem>>, vector<1x128xf32>
    %4 = vector.broadcast %3 : vector<1x128xf32> to vector<8x128xf32>
    %5 = arith.addf %2, %4 : vector<8x128xf32>
    %c0_5 = arith.constant 0 : index
    %c0_6 = arith.constant 0 : index
    %6 = vector.load %arg4[%c0_5, %c0_6] : memref<8x128xf32, #tpu.memory_space<vmem>>, vector<8x128xf32>
    tpu.vector_store %arg4[%c0_5, %c0_6], %5 {strides = array<i32>} : memref<8x128xf32, #tpu.memory_space<vmem>>, vector<8x128xf32>,
    return
  }
  func.func @transform_0(%arg0: i32) -> (i32, i32) {
    %c0_i32 = arith.constant 0 : i32
    %c0_i32_0 = arith.constant 0 : i32
    return %arg0, %c0_i32 : i32, i32
  }
  func.func @transform_1(%arg0: i32) -> (i32, i32) {
    %c0_i32 = arith.constant 0 : i32
    %c0_i32_0 = arith.constant 0 : i32
    %c0_i32_1 = arith.constant 0 : i32
    return %c0_i32, %c0_i32_0 : i32, i32
  }
  func.func @transform_2(%arg0: i32) -> (i32, i32) {
    %c0_i32 = arith.constant 0 : i32
    %c0_i32_0 = arith.constant 0 : i32
    %c0_i32_1 = arith.constant 0 : i32
    return %c0_i32, %c0_i32_0 : i32, i32
  }
  func.func @transform_3(%arg0: i32) -> (i32, i32) {
    %c0_i32 = arith.constant 0 : i32
    %c0_i32_0 = arith.constant 0 : i32
    return %arg0, %c0_i32 : i32, i32
  }
}

</mosaic_0001>

<llo_original>
// kernel: tpu_custom_call.1
$region0: #{tpu_custom_call.1}
  #allocation0 [shape = 'u32[]', space=smem, size = 0x4, offset = 0x4, fixed_abs, tag = 'smem constant byte address 0x4 - core index']
  #allocation1 [shape = 'u32[72,128]{1,0:T(1,128)}', space=vmem, size = 0x9000, scoped, tag = 'internal scratch']
  %s0 = inlined_call_operand.hbm [shape: f32[2,2048], index: 0, kind: input, shape index: {}]
  %s1 = inlined_call_operand.hbm [shape: f32[2048,128], index: 1, kind: input, shape index: {}]
  %s2 = inlined_call_operand.vmem [shape: f32[1,128], index: 2, kind: input, shape index: {}]
  %s3 = inlined_call_operand.hbm [shape: f32[2,128], index: 3, kind: output, shape index: {}]
  %s4 = sld [smem:[#allocation0]]
  $region30: #{tpu_custom_call.1} parent=0
    _
  %s6 = ssub.s32 1, %s4
  %s7 = scalar_select 0, %s6, %s4
  $region1: #{tpu_custom_call.1} parent=0
    #allocation2 [shape = 'u8[65536]{0}', space=vmem, size = 0x10000, scoped, tag = 'input window, operand 0, single buffered']
    #allocation3 [shape = 's32[1]{0}', space=sflag, size = 0x4, scoped, tag = 'scoped memory for tpu_custom_call.1']
    #allocation4 [shape = 's32[1]{0}', space=sflag, size = 0x4, scoped, tag = 'scoped memory for tpu_custom_call.1']
    #allocation5 [shape = 'u8[1048576]{0}', space=vmem, size = 0x100000, scoped, tag = 'input window, operand 1, single buffered']
    #allocation6 [shape = 's32[1]{0}', space=sflag, size = 0x4, scoped, tag = 'scoped memory for tpu_custom_call.1']
    #allocation7 [shape = 'u8[4096]{0}', space=vmem, size = 0x1000, scoped, tag = 'output window, operand 0, single buffered']
    %8 = vsyncpa [#allocation3], 0
    %9 = vsyncpa [#allocation6], 0
    %10 = vsyncpa [#allocation4], 0
    // Predicated region
    $region2: #{tpu_custom_call.1} parent=1 // pred_check
      _
    $region3: #{tpu_custom_call.1} parent=1 // pred_check_branch
      %12 = sbr.rel (0) target = $region5
    $region4: #{tpu_custom_call.1} parent=1 // pred_region
      %14 = vsyncadd [#allocation3], 1536
      %s15 = sshll.u32 %s0, 4
      %s16 = int_to_ptr.hbm [resolvable:$true] %s15
      %s17 = sshll.u32 [#allocation2], 4
      %s18 = int_to_ptr.vmem [resolvable:$true] %s17
      %23 = dma.hbm_to_vmem [thread:$0]  %s16, 512, %s18, [#allocation3], 512, 512, 32
    $region5: #{tpu_custom_call.1} parent=1 // pred_fallthru
      _
    // Predicated region
    $region6: #{tpu_custom_call.1} parent=1 // pred_check
      _
    $region7: #{tpu_custom_call.1} parent=1 // pred_check_branch
      %25 = sbr.rel (0) target = $region9
    $region8: #{tpu_custom_call.1} parent=1 // pred_region
      %27 = vsyncadd [#allocation6], 0
      %s28 = sshll.u32 %s1, 4
      %s29 = int_to_ptr.hbm [resolvable:$true] %s28
      %s30 = sshll.u32 [#allocation5], 4
      %s31 = int_to_ptr.vmem [resolvable:$true] %s30
      %36 = dma.hbm_to_vmem [thread:$0]  %s29, 32768, %s31, [#allocation6], 128, 128, 8
    $region9: #{tpu_custom_call.1} parent=1 // pred_fallthru
      _
    // Predicated region
    $region10: #{tpu_custom_call.1} parent=1 // pred_check
      _
    $region11: #{tpu_custom_call.1} parent=1 // pred_check_branch
      %38 = sbr.rel (0) target = $region13
    $region12: #{tpu_custom_call.1} parent=1 // pred_region
      _
    $region13: #{tpu_custom_call.1} parent=1 // pred_fallthru
      _
    // Predicated region
    $region14: #{tpu_custom_call.1} parent=1 // pred_check
      _
    $region15: #{tpu_custom_call.1} parent=1 // pred_check_branch
      %40 = sbr.rel (0) target = $region17
    $region16: #{tpu_custom_call.1} parent=1 // pred_region
      %42 = dma.done [#allocation3], 2048
    $region17: #{tpu_custom_call.1} parent=1 // pred_fallthru
      _
    // Predicated region
    $region18: #{tpu_custom_call.1} parent=1 // pred_check
      _
    $region19: #{tpu_custom_call.1} parent=1 // pred_check_branch
      %44 = sbr.rel (0) target = $region21
    $region20: #{tpu_custom_call.1} parent=1 // pred_region
      %46 = dma.done [#allocation6], 32768
    $region21: #{tpu_custom_call.1} parent=1 // pred_fallthru
      _
    %v47 = vld [vmem:[#allocation2] sm:$0xff]
    %v48 = vld [vmem:[#allocation2 + $0x8] sm:$0xff]
    %v49 = vld [vmem:[#allocation2 + $0x10] sm:$0xff]
    %v50 = vld [vmem:[#allocation2 + $0x18] sm:$0xff]
    %v51 = vld [vmem:[#allocation2 + $0x20] sm:$0xff]
    %v52 = vld [vmem:[#allocation2 + $0x28] sm:$0xff]
    %v53 = vld [vmem:[#allocation2 + $0x30] sm:$0xff]
    %v54 = vld [vmem:[#allocation2 + $0x38] sm:$0xff]
    %v55 = vld [vmem:[#allocation2 + $0x40] sm:$0xff]
    %v56 = vld [vmem:[#allocation2 + $0x48] sm:$0xff]
    %v57 = vld [vmem:[#allocation2 + $0x50] sm:$0xff]
    %v58 = vld [vmem:[#allocation2 + $0x58] sm:$0xff]
    %v59 = vld [vmem:[#allocation2 + $0x60] sm:$0xff]
    %v60 = vld [vmem:[#allocation2 + $0x68] sm:$0xff]
    %v61 = vld [vmem:[#allocation2 + $0x70] sm:$0xff]
    %v62 = vld [vmem:[#allocation2 + $0x78] sm:$0xff]
    %v63 = vld [vmem:[#allocation5] sm:$0xff]
    %v64 = vld [vmem:[#allocation5 + $0x8] sm:$0xff]
    %v65 = vld [vmem:[#allocation5 + $0x10] sm:$0xff]
    %v66 = vld [vmem:[#allocation5 + $0x18] sm:$0xff]
    %v67 = vld [vmem:[#allocation5 + $0x20] sm:$0xff]
    %v68 = vld [vmem:[#allocation5 + $0x28] sm:$0xff]
    %v69 = vld [vmem:[#allocation5 + $0x30] sm:$0xff]
    %v70 = vld [vmem:[#allocation5 + $0x38] sm:$0xff]
    %v71 = vld [vmem:[#allocation5 + $0x40] sm:$0xff]
    %v72 = vld [vmem:[#allocation5 + $0x48] sm:$0xff]
    %v73 = vld [vmem:[#allocation5 + $0x50] sm:$0xff]
    %v74 = vld [vmem:[#allocation5 + $0x58] sm:$0xff]
    %v75 = vld [vmem:[#allocation5 + $0x60] sm:$0xff]
    %v76 = vld [vmem:[#allocation5 + $0x68] sm:$0xff]
    %v77 = vld [vmem:[#allocation5 + $0x70] sm:$0xff]
    %v78 = vld [vmem:[#allocation5 + $0x78] sm:$0xff]
    %v79 = vld [vmem:[#allocation5 + $0x80] sm:$0xff]
    %v80 = vld [vmem:[#allocation5 + $0x88] sm:$0xff]
    %v81 = vld [vmem:[#allocation5 + $0x90] sm:$0xff]
    %v82 = vld [vmem:[#allocation5 + $0x98] sm:$0xff]
    %v83 = vld [vmem:[#allocation5 + $0xa0] sm:$0xff]
    %v84 = vld [vmem:[#allocation5 + $0xa8] sm:$0xff]
    %v85 = vld [vmem:[#allocation5 + $0xb0] sm:$0xff]
    %v86 = vld [vmem:[#allocation5 + $0xb8] sm:$0xff]
    %v87 = vld [vmem:[#allocation5 + $0xc0] sm:$0xff]
    %v88 = vld [vmem:[#allocation5 + $0xc8] sm:$0xff]
    %v89 = vld [vmem:[#allocation5 + $0xd0] sm:$0xff]
    %v90 = vld [vmem:[#allocation5 + $0xd8] sm:$0xff]
    %v91 = vld [vmem:[#allocation5 + $0xe0] sm:$0xff]
    %v92 = vld [vmem:[#allocation5 + $0xe8] sm:$0xff]
    %v93 = vld [vmem:[#allocation5 + $0xf0] sm:$0xff]
    %v94 = vld [vmem:[#allocation5 + $0xf8] sm:$0xff]
    %v95 = vld [vmem:[#allocation5 + $0x100] sm:$0xff]
    %v96 = vld [vmem:[#allocation5 + $0x108] sm:$0xff]
    %v97 = vld [vmem:[#allocation5 + $0x110] sm:$0xff]
    %v98 = vld [vmem:[#allocation5 + $0x118] sm:$0xff]
    %v99 = vld [vmem:[#allocation5 + $0x120] sm:$0xff]
    %v100 = vld [vmem:[#allocation5 + $0x128] sm:$0xff]
    %v101 = vld [vmem:[#allocation5 + $0x130] sm:$0xff]
    %v102 = vld [vmem:[#allocation5 + $0x138] sm:$0xff]
    %v103 = vld [vmem:[#allocation5 + $0x140] sm:$0xff]
    %v104 = vld [vmem:[#allocation5 + $0x148] sm:$0xff]
    %v105 = vld [vmem:[#allocation5 + $0x150] sm:$0xff]
    %v106 = vld [vmem:[#allocation5 + $0x158] sm:$0xff]
    %v107 = vld [vmem:[#allocation5 + $0x160] sm:$0xff]
    %v108 = vld [vmem:[#allocation5 + $0x168] sm:$0xff]
    %v109 = vld [vmem:[#allocation5 + $0x170] sm:$0xff]
    %v110 = vld [vmem:[#allocation5 + $0x178] sm:$0xff]
    %v111 = vld [vmem:[#allocation5 + $0x180] sm:$0xff]
    %v112 = vld [vmem:[#allocation5 + $0x188] sm:$0xff]
    %v113 = vld [vmem:[#allocation5 + $0x190] sm:$0xff]
    %v114 = vld [vmem:[#allocation5 + $0x198] sm:$0xff]
    %v115 = vld [vmem:[#allocation5 + $0x1a0] sm:$0xff]
    %v116 = vld [vmem:[#allocation5 + $0x1a8] sm:$0xff]
    %v117 = vld [vmem:[#allocation5 + $0x1b0] sm:$0xff]
    %v118 = vld [vmem:[#allocation5 + $0x1b8] sm:$0xff]
    %v119 = vld [vmem:[#allocation5 + $0x1c0] sm:$0xff]
    %v120 = vld [vmem:[#allocation5 + $0x1c8] sm:$0xff]
    %v121 = vld [vmem:[#allocation5 + $0x1d0] sm:$0xff]
    %v122 = vld [vmem:[#allocation5 + $0x1d8] sm:$0xff]
    %v123 = vld [vmem:[#allocation5 + $0x1e0] sm:$0xff]
    %v124 = vld [vmem:[#allocation5 + $0x1e8] sm:$0xff]
    %v125 = vld [vmem:[#allocation5 + $0x1f0] sm:$0xff]
    %v126 = vld [vmem:[#allocation5 + $0x1f8] sm:$0xff]
    %v127 = vld [vmem:[#allocation5 + $0x200] sm:$0xff]
    %v128 = vld [vmem:[#allocation5 + $0x208] sm:$0xff]
    %v129 = vld [vmem:[#allocation5 + $0x210] sm:$0xff]
    %v130 = vld [vmem:[#allocation5 + $0x218] sm:$0xff]
    %v131 = vld [vmem:[#allocation5 + $0x220] sm:$0xff]
    %v132 = vld [vmem:[#allocation5 + $0x228] sm:$0xff]
    %v133 = vld [vmem:[#allocation5 + $0x230] sm:$0xff]
    %v134 = vld [vmem:[#allocation5 + $0x238] sm:$0xff]
    %v135 = vld [vmem:[#allocation5 + $0x240] sm:$0xff]
    %v136 = vld [vmem:[#allocation5 + $0x248] sm:$0xff]
    %v137 = vld [vmem:[#allocation5 + $0x250] sm:$0xff]
    %v138 = vld [vmem:[#allocation5 + $0x258] sm:$0xff]
    %v139 = vld [vmem:[#allocation5 + $0x260] sm:$0xff]
    %v140 = vld [vmem:[#allocation5 + $0x268] sm:$0xff]
    %v141 = vld [vmem:[#allocation5 + $0x270] sm:$0xff]
    %v142 = vld [vmem:[#allocation5 + $0x278] sm:$0xff]
    %v143 = vld [vmem:[#allocation5 + $0x280] sm:$0xff]
    %v144 = vld [vmem:[#allocation5 + $0x288] sm:$0xff]
    %v145 = vld [vmem:[#allocation5 + $0x290] sm:$0xff]
    %v146 = vld [vmem:[#allocation5 + $0x298] sm:$0xff]
    %v147 = vld [vmem:[#allocation5 + $0x2a0] sm:$0xff]
    %v148 = vld [vmem:[#allocation5 + $0x2a8] sm:$0xff]
    %v149 = vld [vmem:[#allocation5 + $0x2b0] sm:$0xff]
    %v150 = vld [vmem:[#allocation5 + $0x2b8] sm:$0xff]
    %v151 = vld [vmem:[#allocation5 + $0x2c0] sm:$0xff]
    %v152 = vld [vmem:[#allocation5 + $0x2c8] sm:$0xff]
    %v153 = vld [vmem:[#allocation5 + $0x2d0] sm:$0xff]
    %v154 = vld [vmem:[#allocation5 + $0x2d8] sm:$0xff]
    %v155 = vld [vmem:[#allocation5 + $0x2e0] sm:$0xff]
    %v156 = vld [vmem:[#allocation5 + $0x2e8] sm:$0xff]
    %v157 = vld [vmem:[#allocation5 + $0x2f0] sm:$0xff]
    %v158 = vld [vmem:[#allocation5 + $0x2f8] sm:$0xff]
    %v159 = vld [vmem:[#allocation5 + $0x300] sm:$0xff]
    %v160 = vld [vmem:[#allocation5 + $0x308] sm:$0xff]
    %v161 = vld [vmem:[#allocation5 + $0x310] sm:$0xff]
    %v162 = vld [vmem:[#allocation5 + $0x318] sm:$0xff]
    %v163 = vld [vmem:[#allocation5 + $0x320] sm:$0xff]
    %v164 = vld [vmem:[#allocation5 + $0x328] sm:$0xff]
    %v165 = vld [vmem:[#allocation5 + $0x330] sm:$0xff]
    %v166 = vld [vmem:[#allocation5 + $0x338] sm:$0xff]
    %v167 = vld [vmem:[#allocation5 + $0x340] sm:$0xff]
    %v168 = vld [vmem:[#allocation5 + $0x348] sm:$0xff]
    %v169 = vld [vmem:[#allocation5 + $0x350] sm:$0xff]
    %v170 = vld [vmem:[#allocation5 + $0x358] sm:$0xff]
    %v171 = vld [vmem:[#allocation5 + $0x360] sm:$0xff]
    %v172 = vld [vmem:[#allocation5 + $0x368] sm:$0xff]
    %v173 = vld [vmem:[#allocation5 + $0x370] sm:$0xff]
    %v174 = vld [vmem:[#allocation5 + $0x378] sm:$0xff]
    %v175 = vld [vmem:[#allocation5 + $0x380] sm:$0xff]
    %v176 = vld [vmem:[#allocation5 + $0x388] sm:$0xff]
    %v177 = vld [vmem:[#allocation5 + $0x390] sm:$0xff]
    %v178 = vld [vmem:[#allocation5 + $0x398] sm:$0xff]
    %v179 = vld [vmem:[#allocation5 + $0x3a0] sm:$0xff]
    %v180 = vld [vmem:[#allocation5 + $0x3a8] sm:$0xff]
    %v181 = vld [vmem:[#allocation5 + $0x3b0] sm:$0xff]
    %v182 = vld [vmem:[#allocation5 + $0x3b8] sm:$0xff]
    %v183 = vld [vmem:[#allocation5 + $0x3c0] sm:$0xff]
    %v184 = vld [vmem:[#allocation5 + $0x3c8] sm:$0xff]
    %v185 = vld [vmem:[#allocation5 + $0x3d0] sm:$0xff]
    %v186 = vld [vmem:[#allocation5 + $0x3d8] sm:$0xff]
    %v187 = vld [vmem:[#allocation5 + $0x3e0] sm:$0xff]
    %v188 = vld [vmem:[#allocation5 + $0x3e8] sm:$0xff]
    %v189 = vld [vmem:[#allocation5 + $0x3f0] sm:$0xff]
    %v190 = vld [vmem:[#allocation5 + $0x3f8] sm:$0xff]
    %v191 = vld [vmem:[#allocation5 + $0x400] sm:$0xff]
    %v192 = vld [vmem:[#allocation5 + $0x408] sm:$0xff]
    %v193 = vld [vmem:[#allocation5 + $0x410] sm:$0xff]
    %v194 = vld [vmem:[#allocation5 + $0x418] sm:$0xff]
    %v195 = vld [vmem:[#allocation5 + $0x420] sm:$0xff]
    %v196 = vld [vmem:[#allocation5 + $0x428] sm:$0xff]
    %v197 = vld [vmem:[#allocation5 + $0x430] sm:$0xff]
    %v198 = vld [vmem:[#allocation5 + $0x438] sm:$0xff]
    %v199 = vld [vmem:[#allocation5 + $0x440] sm:$0xff]
    %v200 = vld [vmem:[#allocation5 + $0x448] sm:$0xff]
    %v201 = vld [vmem:[#allocation5 + $0x450] sm:$0xff]
    %v202 = vld [vmem:[#allocation5 + $0x458] sm:$0xff]
    %v203 = vld [vmem:[#allocation5 + $0x460] sm:$0xff]
    %v204 = vld [vmem:[#allocation5 + $0x468] sm:$0xff]
    %v205 = vld [vmem:[#allocation5 + $0x470] sm:$0xff]
    %v206 = vld [vmem:[#allocation5 + $0x478] sm:$0xff]
    %v207 = vld [vmem:[#allocation5 + $0x480] sm:$0xff]
    %v208 = vld [vmem:[#allocation5 + $0x488] sm:$0xff]
    %v209 = vld [vmem:[#allocation5 + $0x490] sm:$0xff]
    %v210 = vld [vmem:[#allocation5 + $0x498] sm:$0xff]
    %v211 = vld [vmem:[#allocation5 + $0x4a0] sm:$0xff]
    %v212 = vld [vmem:[#allocation5 + $0x4a8] sm:$0xff]
    %v213 = vld [vmem:[#allocation5 + $0x4b0] sm:$0xff]
    %v214 = vld [vmem:[#allocation5 + $0x4b8] sm:$0xff]
    %v215 = vld [vmem:[#allocation5 + $0x4c0] sm:$0xff]
    %v216 = vld [vmem:[#allocation5 + $0x4c8] sm:$0xff]
    %v217 = vld [vmem:[#allocation5 + $0x4d0] sm:$0xff]
    %v218 = vld [vmem:[#allocation5 + $0x4d8] sm:$0xff]
    %v219 = vld [vmem:[#allocation5 + $0x4e0] sm:$0xff]
    %v220 = vld [vmem:[#allocation5 + $0x4e8] sm:$0xff]
    %v221 = vld [vmem:[#allocation5 + $0x4f0] sm:$0xff]
    %v222 = vld [vmem:[#allocation5 + $0x4f8] sm:$0xff]
    %v223 = vld [vmem:[#allocation5 + $0x500] sm:$0xff]
    %v224 = vld [vmem:[#allocation5 + $0x508] sm:$0xff]
    %v225 = vld [vmem:[#allocation5 + $0x510] sm:$0xff]
    %v226 = vld [vmem:[#allocation5 + $0x518] sm:$0xff]
    %v227 = vld [vmem:[#allocation5 + $0x520] sm:$0xff]
    %v228 = vld [vmem:[#allocation5 + $0x528] sm:$0xff]
    %v229 = vld [vmem:[#allocation5 + $0x530] sm:$0xff]
    %v230 = vld [vmem:[#allocation5 + $0x538] sm:$0xff]
    %v231 = vld [vmem:[#allocation5 + $0x540] sm:$0xff]
    %v232 = vld [vmem:[#allocation5 + $0x548] sm:$0xff]
    %v233 = vld [vmem:[#allocation5 + $0x550] sm:$0xff]
    %v234 = vld [vmem:[#allocation5 + $0x558] sm:$0xff]
    %v235 = vld [vmem:[#allocation5 + $0x560] sm:$0xff]
    %v236 = vld [vmem:[#allocation5 + $0x568] sm:$0xff]
    %v237 = vld [vmem:[#allocation5 + $0x570] sm:$0xff]
    %v238 = vld [vmem:[#allocation5 + $0x578] sm:$0xff]
    %v239 = vld [vmem:[#allocation5 + $0x580] sm:$0xff]
    %v240 = vld [vmem:[#allocation5 + $0x588] sm:$0xff]
    %v241 = vld [vmem:[#allocation5 + $0x590] sm:$0xff]
    %v242 = vld [vmem:[#allocation5 + $0x598] sm:$0xff]
    %v243 = vld [vmem:[#allocation5 + $0x5a0] sm:$0xff]
    %v244 = vld [vmem:[#allocation5 + $0x5a8] sm:$0xff]
    %v245 = vld [vmem:[#allocation5 + $0x5b0] sm:$0xff]
    %v246 = vld [vmem:[#allocation5 + $0x5b8] sm:$0xff]
    %v247 = vld [vmem:[#allocation5 + $0x5c0] sm:$0xff]
    %v248 = vld [vmem:[#allocation5 + $0x5c8] sm:$0xff]
    %v249 = vld [vmem:[#allocation5 + $0x5d0] sm:$0xff]
    %v250 = vld [vmem:[#allocation5 + $0x5d8] sm:$0xff]
    %v251 = vld [vmem:[#allocation5 + $0x5e0] sm:$0xff]
    %v252 = vld [vmem:[#allocation5 + $0x5e8] sm:$0xff]
    %v253 = vld [vmem:[#allocation5 + $0x5f0] sm:$0xff]
    %v254 = vld [vmem:[#allocation5 + $0x5f8] sm:$0xff]
    %v255 = vld [vmem:[#allocation5 + $0x600] sm:$0xff]
    %v256 = vld [vmem:[#allocation5 + $0x608] sm:$0xff]
    %v257 = vld [vmem:[#allocation5 + $0x610] sm:$0xff]
    %v258 = vld [vmem:[#allocation5 + $0x618] sm:$0xff]
    %v259 = vld [vmem:[#allocation5 + $0x620] sm:$0xff]
    %v260 = vld [vmem:[#allocation5 + $0x628] sm:$0xff]
    %v261 = vld [vmem:[#allocation5 + $0x630] sm:$0xff]
    %v262 = vld [vmem:[#allocation5 + $0x638] sm:$0xff]
    %v263 = vld [vmem:[#allocation5 + $0x640] sm:$0xff]
    %v264 = vld [vmem:[#allocation5 + $0x648] sm:$0xff]
    %v265 = vld [vmem:[#allocation5 + $0x650] sm:$0xff]
    %v266 = vld [vmem:[#allocation5 + $0x658] sm:$0xff]
    %v267 = vld [vmem:[#allocation5 + $0x660] sm:$0xff]
    %v268 = vld [vmem:[#allocation5 + $0x668] sm:$0xff]
    %v269 = vld [vmem:[#allocation5 + $0x670] sm:$0xff]
    %v270 = vld [vmem:[#allocation5 + $0x678] sm:$0xff]
    %v271 = vld [vmem:[#allocation5 + $0x680] sm:$0xff]
    %v272 = vld [vmem:[#allocation5 + $0x688] sm:$0xff]
    %v273 = vld [vmem:[#allocation5 + $0x690] sm:$0xff]
    %v274 = vld [vmem:[#allocation5 + $0x698] sm:$0xff]
    %v275 = vld [vmem:[#allocation5 + $0x6a0] sm:$0xff]
    %v276 = vld [vmem:[#allocation5 + $0x6a8] sm:$0xff]
    %v277 = vld [vmem:[#allocation5 + $0x6b0] sm:$0xff]
    %v278 = vld [vmem:[#allocation5 + $0x6b8] sm:$0xff]
    %v279 = vld [vmem:[#allocation5 + $0x6c0] sm:$0xff]
    %v280 = vld [vmem:[#allocation5 + $0x6c8] sm:$0xff]
    %v281 = vld [vmem:[#allocation5 + $0x6d0] sm:$0xff]
    %v282 = vld [vmem:[#allocation5 + $0x6d8] sm:$0xff]
    %v283 = vld [vmem:[#allocation5 + $0x6e0] sm:$0xff]
    %v284 = vld [vmem:[#allocation5 + $0x6e8] sm:$0xff]
    %v285 = vld [vmem:[#allocation5 + $0x6f0] sm:$0xff]
    %v286 = vld [vmem:[#allocation5 + $0x6f8] sm:$0xff]
    %v287 = vld [vmem:[#allocation5 + $0x700] sm:$0xff]
    %v288 = vld [vmem:[#allocation5 + $0x708] sm:$0xff]
    %v289 = vld [vmem:[#allocation5 + $0x710] sm:$0xff]
    %v290 = vld [vmem:[#allocation5 + $0x718] sm:$0xff]
    %v291 = vld [vmem:[#allocation5 + $0x720] sm:$0xff]
    %v292 = vld [vmem:[#allocation5 + $0x728] sm:$0xff]
    %v293 = vld [vmem:[#allocation5 + $0x730] sm:$0xff]
    %v294 = vld [vmem:[#allocation5 + $0x738] sm:$0xff]
    %v295 = vld [vmem:[#allocation5 + $0x740] sm:$0xff]
    %v296 = vld [vmem:[#allocation5 + $0x748] sm:$0xff]
    %v297 = vld [vmem:[#allocation5 + $0x750] sm:$0xff]
    %v298 = vld [vmem:[#allocation5 + $0x758] sm:$0xff]
    %v299 = vld [vmem:[#allocation5 + $0x760] sm:$0xff]
    %v300 = vld [vmem:[#allocation5 + $0x768] sm:$0xff]
    %v301 = vld [vmem:[#allocation5 + $0x770] sm:$0xff]
    %v302 = vld [vmem:[#allocation5 + $0x778] sm:$0xff]
    %v303 = vld [vmem:[#allocation5 + $0x780] sm:$0xff]
    %v304 = vld [vmem:[#allocation5 + $0x788] sm:$0xff]
    %v305 = vld [vmem:[#allocation5 + $0x790] sm:$0xff]
    %v306 = vld [vmem:[#allocation5 + $0x798] sm:$0xff]
    %v307 = vld [vmem:[#allocation5 + $0x7a0] sm:$0xff]
    %v308 = vld [vmem:[#allocation5 + $0x7a8] sm:$0xff]
    %v309 = vld [vmem:[#allocation5 + $0x7b0] sm:$0xff]
    %v310 = vld [vmem:[#allocation5 + $0x7b8] sm:$0xff]
    %v311 = vld [vmem:[#allocation5 + $0x7c0] sm:$0xff]
    %v312 = vld [vmem:[#allocation5 + $0x7c8] sm:$0xff]
    %v313 = vld [vmem:[#allocation5 + $0x7d0] sm:$0xff]
    %v314 = vld [vmem:[#allocation5 + $0x7d8] sm:$0xff]
    %v315 = vld [vmem:[#allocation5 + $0x7e0] sm:$0xff]
    %v316 = vld [vmem:[#allocation5 + $0x7e8] sm:$0xff]
    %v317 = vld [vmem:[#allocation5 + $0x7f0] sm:$0xff]
    %v318 = vld [vmem:[#allocation5 + $0x7f8] sm:$0xff]
    %v319 = vld [vmem:[%s2] sm:$0x1]
    %v321 = vperm.slane %v319, 0
    %339 = vst [vmem:[#allocation1] ss:$4 sm:$0xff] %v47
    %s340 = scalar_lea.vmem [#allocation1], 1
    %341 = vst [vmem:[%s340] ss:$4 sm:$0xff] %v51
    %s342 = scalar_lea.vmem [#allocation1], 2
    %343 = vst [vmem:[%s342] ss:$4 sm:$0xff] %v55
    %s344 = scalar_lea.vmem [#allocation1], 3
    %345 = vst [vmem:[%s344] ss:$4 sm:$0xff] %v59
    %s346 = scalar_lea.vmem [#allocation1], 32
    %347 = vst [vmem:[%s346] ss:$4 sm:$0xff] %v48
    %s348 = scalar_lea.vmem [#allocation1], 33
    %349 = vst [vmem:[%s348] ss:$4 sm:$0xff] %v52
    %s350 = scalar_lea.vmem [#allocation1], 34
    %351 = vst [vmem:[%s350] ss:$4 sm:$0xff] %v56
    %s352 = scalar_lea.vmem [#allocation1], 35
    %353 = vst [vmem:[%s352] ss:$4 sm:$0xff] %v60
    %v354 = vld.sshfl [vmem:[#allocation1] sm:$0xff pattern:$0x73625140]
    %v355 = vld.sshfl [vmem:[#allocation1 + $0x8] sm:$0xff pattern:$0x73625140]
    %v356 = vld.sshfl [vmem:[#allocation1 + $0x10] sm:$0xff pattern:$0x73625140]
    %v357 = vld.sshfl [vmem:[#allocation1 + $0x18] sm:$0xff pattern:$0x73625140]
    %v358 = vld.sshfl [vmem:[#allocation1 + $0x20] sm:$0xff pattern:$0x73625140]
    %v359 = vld.sshfl [vmem:[#allocation1 + $0x28] sm:$0xff pattern:$0x73625140]
    %v360 = vld.sshfl [vmem:[#allocation1 + $0x30] sm:$0xff pattern:$0x73625140]
    %v361 = vld.sshfl [vmem:[#allocation1 + $0x38] sm:$0xff pattern:$0x73625140]
    %362 = vst [vmem:[#allocation1] ss:$4 sm:$0xff] %v49
    %363 = vst [vmem:[%s340] ss:$4 sm:$0xff] %v53
    %364 = vst [vmem:[%s342] ss:$4 sm:$0xff] %v57
    %365 = vst [vmem:[%s344] ss:$4 sm:$0xff] %v61
    %366 = vst [vmem:[%s346] ss:$4 sm:$0xff] %v50
    %367 = vst [vmem:[%s348] ss:$4 sm:$0xff] %v54
    %368 = vst [vmem:[%s350] ss:$4 sm:$0xff] %v58
    %369 = vst [vmem:[%s352] ss:$4 sm:$0xff] %v62
    %v370 = vld.sshfl [vmem:[#allocation1] sm:$0xff pattern:$0x73625140]
    %v371 = vld.sshfl [vmem:[#allocation1 + $0x8] sm:$0xff pattern:$0x73625140]
    %v372 = vld.sshfl [vmem:[#allocation1 + $0x10] sm:$0xff pattern:$0x73625140]
    %v373 = vld.sshfl [vmem:[#allocation1 + $0x18] sm:$0xff pattern:$0x73625140]
    %v374 = vld.sshfl [vmem:[#allocation1 + $0x20] sm:$0xff pattern:$0x73625140]
    %v375 = vld.sshfl [vmem:[#allocation1 + $0x28] sm:$0xff pattern:$0x73625140]
    %v376 = vld.sshfl [vmem:[#allocation1 + $0x30] sm:$0xff pattern:$0x73625140]
    %v377 = vld.sshfl [vmem:[#allocation1 + $0x38] sm:$0xff pattern:$0x73625140]
    %394 = vmatpush.msra.mxu0 %v78
    %395 = vmatpush.msra.mxu0 %v77
    %396 = vmatpush.msra.mxu0 %v76
    %397 = vmatpush.msra.mxu0 %v75
    %398 = vmatpush.msra.mxu0 %v74
    %399 = vmatpush.msra.mxu0 %v73
    %400 = vmatpush.msra.mxu0 %v72
    %401 = vmatpush.msra.mxu0 %v71
    %402 = vmatpush.msra.mxu0 %v70
    %403 = vmatpush.msra.mxu0 %v69
    %404 = vmatpush.msra.mxu0 %v68
    %405 = vmatpush.msra.mxu0 %v67
    %406 = vmatpush.msra.mxu0 %v66
    %407 = vmatpush.msra.mxu0 %v65
    %408 = vmatpush.msra.mxu0 %v64
    %409 = vmatpush.msra.mxu0 %v63
    %410 = vmatmul.f32.gmra.mxu0 %v354
    %v411 = vpop.f32.mrf.mxu0
    %v412 = vadd.f32 %v321, %v411
    %413 = vdwg.mxu0
    %414 = vmatpush.msra.mxu0 %v94
    %415 = vmatpush.msra.mxu0 %v93
    %416 = vmatpush.msra.mxu0 %v92
    %417 = vmatpush.msra.mxu0 %v91
    %418 = vmatpush.msra.mxu0 %v90
    %419 = vmatpush.msra.mxu0 %v89
    %420 = vmatpush.msra.mxu0 %v88
    %421 = vmatpush.msra.mxu0 %v87
    %422 = vmatpush.msra.mxu0 %v86
    %423 = vmatpush.msra.mxu0 %v85
    %424 = vmatpush.msra.mxu0 %v84
    %425 = vmatpush.msra.mxu0 %v83
    %426 = vmatpush.msra.mxu0 %v82
    %427 = vmatpush.msra.mxu0 %v81
    %428 = vmatpush.msra.mxu0 %v80
    %429 = vmatpush.msra.mxu0 %v79
    %430 = vmatmul.f32.gmra.mxu0 %v355
    %v431 = vpop.f32.mrf.mxu0
    %v432 = vadd.f32 %v412, %v431
    %433 = vdwg.mxu0
    %434 = vmatpush.msra.mxu0 %v110
    %435 = vmatpush.msra.mxu0 %v109
    %436 = vmatpush.msra.mxu0 %v108
    %437 = vmatpush.msra.mxu0 %v107
    %438 = vmatpush.msra.mxu0 %v106
    %439 = vmatpush.msra.mxu0 %v105
    %440 = vmatpush.msra.mxu0 %v104
    %441 = vmatpush.msra.mxu0 %v103
    %442 = vmatpush.msra.mxu0 %v102
    %443 = vmatpush.msra.mxu0 %v101
    %444 = vmatpush.msra.mxu0 %v100
    %445 = vmatpush.msra.mxu0 %v99
    %446 = vmatpush.msra.mxu0 %v98
    %447 = vmatpush.msra.mxu0 %v97
    %448 = vmatpush.msra.mxu0 %v96
    %449 = vmatpush.msra.mxu0 %v95
    %450 = vmatmul.f32.gmra.mxu0 %v356
    %v451 = vpop.f32.mrf.mxu0
    %v452 = vadd.f32 %v432, %v451
    %453 = vdwg.mxu0
    %454 = vmatpush.msra.mxu0 %v126
    %455 = vmatpush.msra.mxu0 %v125
    %456 = vmatpush.msra.mxu0 %v124
    %457 = vmatpush.msra.mxu0 %v123
    %458 = vmatpush.msra.mxu0 %v122
    %459 = vmatpush.msra.mxu0 %v121
    %460 = vmatpush.msra.mxu0 %v120
    %461 = vmatpush.msra.mxu0 %v119
    %462 = vmatpush.msra.mxu0 %v118
    %463 = vmatpush.msra.mxu0 %v117
    %464 = vmatpush.msra.mxu0 %v116
    %465 = vmatpush.msra.mxu0 %v115
    %466 = vmatpush.msra.mxu0 %v114
    %467 = vmatpush.msra.mxu0 %v113
    %468 = vmatpush.msra.mxu0 %v112
    %469 = vmatpush.msra.mxu0 %v111
    %470 = vmatmul.f32.gmra.mxu0 %v357
    %v471 = vpop.f32.mrf.mxu0
    %v472 = vadd.f32 %v452, %v471
    %473 = vdwg.mxu0
    %474 = vmatpush.msra.mxu0 %v142
    %475 = vmatpush.msra.mxu0 %v141
    %476 = vmatpush.msra.mxu0 %v140
    %477 = vmatpush.msra.mxu0 %v139
    %478 = vmatpush.msra.mxu0 %v138
    %479 = vmatpush.msra.mxu0 %v137
    %480 = vmatpush.msra.mxu0 %v136
    %481 = vmatpush.msra.mxu0 %v135
    %482 = vmatpush.msra.mxu0 %v134
    %483 = vmatpush.msra.mxu0 %v133
    %484 = vmatpush.msra.mxu0 %v132
    %485 = vmatpush.msra.mxu0 %v131
    %486 = vmatpush.msra.mxu0 %v130
    %487 = vmatpush.msra.mxu0 %v129
    %488 = vmatpush.msra.mxu0 %v128
    %489 = vmatpush.msra.mxu0 %v127
    %490 = vmatmul.f32.gmra.mxu0 %v358
    %v491 = vpop.f32.mrf.mxu0
    %v492 = vadd.f32 %v472, %v491
    %493 = vdwg.mxu0
    %494 = vmatpush.msra.mxu0 %v158
    %495 = vmatpush.msra.mxu0 %v157
    %496 = vmatpush.msra.mxu0 %v156
    %497 = vmatpush.msra.mxu0 %v155
    %498 = vmatpush.msra.mxu0 %v154
    %499 = vmatpush.msra.mxu0 %v153
    %500 = vmatpush.msra.mxu0 %v152
    %501 = vmatpush.msra.mxu0 %v151
    %502 = vmatpush.msra.mxu0 %v150
    %503 = vmatpush.msra.mxu0 %v149
    %504 = vmatpush.msra.mxu0 %v148
    %505 = vmatpush.msra.mxu0 %v147
    %506 = vmatpush.msra.mxu0 %v146
    %507 = vmatpush.msra.mxu0 %v145
    %508 = vmatpush.msra.mxu0 %v144
    %509 = vmatpush.msra.mxu0 %v143
    %510 = vmatmul.f32.gmra.mxu0 %v359
    %v511 = vpop.f32.mrf.mxu0
    %v512 = vadd.f32 %v492, %v511
    %513 = vdwg.mxu0
    %514 = vmatpush.msra.mxu0 %v174
    %515 = vmatpush.msra.mxu0 %v173
    %516 = vmatpush.msra.mxu0 %v172
    %517 = vmatpush.msra.mxu0 %v171
    %518 = vmatpush.msra.mxu0 %v170
    %519 = vmatpush.msra.mxu0 %v169
    %520 = vmatpush.msra.mxu0 %v168
    %521 = vmatpush.msra.mxu0 %v167
    %522 = vmatpush.msra.mxu0 %v166
    %523 = vmatpush.msra.mxu0 %v165
    %524 = vmatpush.msra.mxu0 %v164
    %525 = vmatpush.msra.mxu0 %v163
    %526 = vmatpush.msra.mxu0 %v162
    %527 = vmatpush.msra.mxu0 %v161
    %528 = vmatpush.msra.mxu0 %v160
    %529 = vmatpush.msra.mxu0 %v159
    %530 = vmatmul.f32.gmra.mxu0 %v360
    %v531 = vpop.f32.mrf.mxu0
    %v532 = vadd.f32 %v512, %v531
    %533 = vdwg.mxu0
    %534 = vmatpush.msra.mxu0 %v190
    %535 = vmatpush.msra.mxu0 %v189
    %536 = vmatpush.msra.mxu0 %v188
    %537 = vmatpush.msra.mxu0 %v187
    %538 = vmatpush.msra.mxu0 %v186
    %539 = vmatpush.msra.mxu0 %v185
    %540 = vmatpush.msra.mxu0 %v184
    %541 = vmatpush.msra.mxu0 %v183
    %542 = vmatpush.msra.mxu0 %v182
    %543 = vmatpush.msra.mxu0 %v181
    %544 = vmatpush.msra.mxu0 %v180
    %545 = vmatpush.msra.mxu0 %v179
    %546 = vmatpush.msra.mxu0 %v178
    %547 = vmatpush.msra.mxu0 %v177
    %548 = vmatpush.msra.mxu0 %v176
    %549 = vmatpush.msra.mxu0 %v175
    %550 = vmatmul.f32.gmra.mxu0 %v361
    %v551 = vpop.f32.mrf.mxu0
    %v552 = vadd.f32 %v532, %v551
    %553 = vdwg.mxu0
    %554 = vmatpush.msra.mxu0 %v206
    %555 = vmatpush.msra.mxu0 %v205
    %556 = vmatpush.msra.mxu0 %v204
    %557 = vmatpush.msra.mxu0 %v203
    %558 = vmatpush.msra.mxu0 %v202
    %559 = vmatpush.msra.mxu0 %v201
    %560 = vmatpush.msra.mxu0 %v200
    %561 = vmatpush.msra.mxu0 %v199
    %562 = vmatpush.msra.mxu0 %v198
    %563 = vmatpush.msra.mxu0 %v197
    %564 = vmatpush.msra.mxu0 %v196
    %565 = vmatpush.msra.mxu0 %v195
    %566 = vmatpush.msra.mxu0 %v194
    %567 = vmatpush.msra.mxu0 %v193
    %568 = vmatpush.msra.mxu0 %v192
    %569 = vmatpush.msra.mxu0 %v191
    %570 = vmatmul.f32.gmra.mxu0 %v370
    %v571 = vpop.f32.mrf.mxu0
    %v572 = vadd.f32 %v552, %v571
    %573 = vdwg.mxu0
    %574 = vmatpush.msra.mxu0 %v222
    %575 = vmatpush.msra.mxu0 %v221
    %576 = vmatpush.msra.mxu0 %v220
    %577 = vmatpush.msra.mxu0 %v219
    %578 = vmatpush.msra.mxu0 %v218
    %579 = vmatpush.msra.mxu0 %v217
    %580 = vmatpush.msra.mxu0 %v216
    %581 = vmatpush.msra.mxu0 %v215
    %582 = vmatpush.msra.mxu0 %v214
    %583 = vmatpush.msra.mxu0 %v213
    %584 = vmatpush.msra.mxu0 %v212
    %585 = vmatpush.msra.mxu0 %v211
    %586 = vmatpush.msra.mxu0 %v210
    %587 = vmatpush.msra.mxu0 %v209
    %588 = vmatpush.msra.mxu0 %v208
    %589 = vmatpush.msra.mxu0 %v207
    %590 = vmatmul.f32.gmra.mxu0 %v371
    %v591 = vpop.f32.mrf.mxu0
    %v592 = vadd.f32 %v572, %v591
    %593 = vdwg.mxu0
    %594 = vmatpush.msra.mxu0 %v238
    %595 = vmatpush.msra.mxu0 %v237
    %596 = vmatpush.msra.mxu0 %v236
    %597 = vmatpush.msra.mxu0 %v235
    %598 = vmatpush.msra.mxu0 %v234
    %599 = vmatpush.msra.mxu0 %v233
    %600 = vmatpush.msra.mxu0 %v232
    %601 = vmatpush.msra.mxu0 %v231
    %602 = vmatpush.msra.mxu0 %v230
    %603 = vmatpush.msra.mxu0 %v229
    %604 = vmatpush.msra.mxu0 %v228
    %605 = vmatpush.msra.mxu0 %v227
    %606 = vmatpush.msra.mxu0 %v226
    %607 = vmatpush.msra.mxu0 %v225
    %608 = vmatpush.msra.mxu0 %v224
    %609 = vmatpush.msra.mxu0 %v223
    %610 = vmatmul.f32.gmra.mxu0 %v372
    %v611 = vpop.f32.mrf.mxu0
    %v612 = vadd.f32 %v592, %v611
    %613 = vdwg.mxu0
    %614 = vmatpush.msra.mxu0 %v254
    %615 = vmatpush.msra.mxu0 %v253
    %616 = vmatpush.msra.mxu0 %v252
    %617 = vmatpush.msra.mxu0 %v251
    %618 = vmatpush.msra.mxu0 %v250
    %619 = vmatpush.msra.mxu0 %v249
    %620 = vmatpush.msra.mxu0 %v248
    %621 = vmatpush.msra.mxu0 %v247
    %622 = vmatpush.msra.mxu0 %v246
    %623 = vmatpush.msra.mxu0 %v245
    %624 = vmatpush.msra.mxu0 %v244
    %625 = vmatpush.msra.mxu0 %v243
    %626 = vmatpush.msra.mxu0 %v242
    %627 = vmatpush.msra.mxu0 %v241
    %628 = vmatpush.msra.mxu0 %v240
    %629 = vmatpush.msra.mxu0 %v239
    %630 = vmatmul.f32.gmra.mxu0 %v373
    %v631 = vpop.f32.mrf.mxu0
    %v632 = vadd.f32 %v612, %v631
    %633 = vdwg.mxu0
    %634 = vmatpush.msra.mxu0 %v270
    %635 = vmatpush.msra.mxu0 %v269
    %636 = vmatpush.msra.mxu0 %v268
    %637 = vmatpush.msra.mxu0 %v267
    %638 = vmatpush.msra.mxu0 %v266
    %639 = vmatpush.msra.mxu0 %v265
    %640 = vmatpush.msra.mxu0 %v264
    %641 = vmatpush.msra.mxu0 %v263
    %642 = vmatpush.msra.mxu0 %v262
    %643 = vmatpush.msra.mxu0 %v261
    %644 = vmatpush.msra.mxu0 %v260
    %645 = vmatpush.msra.mxu0 %v259
    %646 = vmatpush.msra.mxu0 %v258
    %647 = vmatpush.msra.mxu0 %v257
    %648 = vmatpush.msra.mxu0 %v256
    %649 = vmatpush.msra.mxu0 %v255
    %650 = vmatmul.f32.gmra.mxu0 %v374
    %v651 = vpop.f32.mrf.mxu0
    %v652 = vadd.f32 %v632, %v651
    %653 = vdwg.mxu0
    %654 = vmatpush.msra.mxu0 %v286
    %655 = vmatpush.msra.mxu0 %v285
    %656 = vmatpush.msra.mxu0 %v284
    %657 = vmatpush.msra.mxu0 %v283
    %658 = vmatpush.msra.mxu0 %v282
    %659 = vmatpush.msra.mxu0 %v281
    %660 = vmatpush.msra.mxu0 %v280
    %661 = vmatpush.msra.mxu0 %v279
    %662 = vmatpush.msra.mxu0 %v278
    %663 = vmatpush.msra.mxu0 %v277
    %664 = vmatpush.msra.mxu0 %v276
    %665 = vmatpush.msra.mxu0 %v275
    %666 = vmatpush.msra.mxu0 %v274
    %667 = vmatpush.msra.mxu0 %v273
    %668 = vmatpush.msra.mxu0 %v272
    %669 = vmatpush.msra.mxu0 %v271
    %670 = vmatmul.f32.gmra.mxu0 %v375
    %v671 = vpop.f32.mrf.mxu0
    %v672 = vadd.f32 %v652, %v671
    %673 = vdwg.mxu0
    %674 = vmatpush.msra.mxu0 %v302
    %675 = vmatpush.msra.mxu0 %v301
    %676 = vmatpush.msra.mxu0 %v300
    %677 = vmatpush.msra.mxu0 %v299
    %678 = vmatpush.msra.mxu0 %v298
    %679 = vmatpush.msra.mxu0 %v297
    %680 = vmatpush.msra.mxu0 %v296
    %681 = vmatpush.msra.mxu0 %v295
    %682 = vmatpush.msra.mxu0 %v294
    %683 = vmatpush.msra.mxu0 %v293
    %684 = vmatpush.msra.mxu0 %v292
    %685 = vmatpush.msra.mxu0 %v291
    %686 = vmatpush.msra.mxu0 %v290
    %687 = vmatpush.msra.mxu0 %v289
    %688 = vmatpush.msra.mxu0 %v288
    %689 = vmatpush.msra.mxu0 %v287
    %690 = vmatmul.f32.gmra.mxu0 %v376
    %v691 = vpop.f32.mrf.mxu0
    %v692 = vadd.f32 %v672, %v691
    %693 = vdwg.mxu0
    %694 = vmatpush.msra.mxu0 %v318
    %695 = vmatpush.msra.mxu0 %v317
    %696 = vmatpush.msra.mxu0 %v316
    %697 = vmatpush.msra.mxu0 %v315
    %698 = vmatpush.msra.mxu0 %v314
    %699 = vmatpush.msra.mxu0 %v313
    %700 = vmatpush.msra.mxu0 %v312
    %701 = vmatpush.msra.mxu0 %v311
    %702 = vmatpush.msra.mxu0 %v310
    %703 = vmatpush.msra.mxu0 %v309
    %704 = vmatpush.msra.mxu0 %v308
    %705 = vmatpush.msra.mxu0 %v307
    %706 = vmatpush.msra.mxu0 %v306
    %707 = vmatpush.msra.mxu0 %v305
    %708 = vmatpush.msra.mxu0 %v304
    %709 = vmatpush.msra.mxu0 %v303
    %710 = vmatmul.f32.gmra.mxu0 %v377
    %v711 = vpop.f32.mrf.mxu0
    %v712 = vadd.f32 %v692, %v711
    %713 = vdwg.mxu0
    %714 = vst [vmem:[#allocation7] sm:$0xff] %v712
    // Predicated region
    $region22: #{tpu_custom_call.1} parent=1 // pred_check
      _
    $region23: #{tpu_custom_call.1} parent=1 // pred_check_branch
      %716 = sbr.rel (0) target = $region25
    $region24: #{tpu_custom_call.1} parent=1 // pred_region
      %718 = vsyncadd [#allocation4], 96
      %s719 = sshll.u32 [#allocation7], 4
      %s720 = int_to_ptr.vmem [resolvable:$true] %s719
      %s721 = sshll.u32 %s3, 4
      %s722 = int_to_ptr.hbm [resolvable:$true] %s721
      %727 = dma.vmem_to_hbm [thread:$0]  %s720, 32, %s722, [#allocation4], 32, 32, 2
    $region25: #{tpu_custom_call.1} parent=1 // pred_fallthru
      _
    // Predicated region
    $region26: #{tpu_custom_call.1} parent=1 // pred_check
      _
    $region27: #{tpu_custom_call.1} parent=1 // pred_check_branch
      %729 = sbr.rel (0) target = $region29
    $region28: #{tpu_custom_call.1} parent=1 // pred_region
      %731 = dma.done [#allocation4], 128
    $region29: #{tpu_custom_call.1} parent=1 // pred_fallthru
      _
    %732 = vsyncpa [#allocation3], 1
    %733 = vsyncpa [#allocation6], 1
    %734 = vsyncpa [#allocation4], 1

</llo_original>
